<compile_context>
chip_gen: v7x
topology: tpu7x:2x2x1
jax: 0.10.0
libtpu: 0.0.40
codegen_flags: <defaults>
</compile_context>

<pallas_src>
import functools

import jax
import jax.numpy as jnp
from jax.experimental import pallas as pl
from jax.experimental.pallas import tpu as pltpu

BN_EPS = 1e-5
LANE = 128   # TPU vreg lane width
N_LAYERS = 7


def _round_up(x, m):
    return ((x + m - 1) // m) * m


# ---------------------------------------------------------------------------
# Kernel: one batch tile through the whole (BN-folded) MLP.
#   x_ref : (tb, F)        f32   activation tile (unpadded features)
#   w_ref : (7, 128, 128)  bf16  packed fused weights (VMEM-resident)
#   b_ref : (8, 128)       f32   packed fused biases  (VMEM-resident)
#   o_ref : (tb, n_out)    f32   real output columns only
# ---------------------------------------------------------------------------
def mlp_kernel(x_ref, w_ref, b_ref, o_ref):
    f_in = x_ref.shape[1]
    n_out = o_ref.shape[1]

    # Layer 1: only the first f_in rows of the padded weight slot are real.
    h = x_ref[...].astype(jnp.bfloat16)                         # (tb, f_in)
    w0 = w_ref[0, :f_in, :]                                     # (f_in, 128)
    z = jnp.dot(h, w0, preferred_element_type=jnp.float32) + b_ref[0:1, :]
    h = jnp.maximum(z, 0.0)                                     # (tb, 128) f32

    # Hidden blocks 2..6: Linear(+folded BN of previous block) -> ReLU.
    for i in range(1, 6):
        z = jnp.dot(h.astype(jnp.bfloat16), w_ref[i],
                    preferred_element_type=jnp.float32) + b_ref[i:i + 1, :]
        h = jnp.maximum(z, 0.0)

    # Final Linear (BN of block 6 folded in); no ReLU.
    y = jnp.dot(h.astype(jnp.bfloat16), w_ref[6],
                preferred_element_type=jnp.float32) + b_ref[6:7, :]
    o_ref[...] = y[:, :n_out]


# ---------------------------------------------------------------------------
# Param prep (run ONCE per model): fold eval-mode BN into the following
# Linear, pad every layer to 128 lanes, pack weights/biases into two arrays.
# ---------------------------------------------------------------------------
def prepare_params(params):
    hidden = params["hidden"]                       # 6 x (w, b, bn)
    ws = [w for (w, _, _) in hidden] + [params["final_w"]]
    bs = [b for (_, b, _) in hidden] + [params["final_b"]]

    scales, shifts = [], []
    for (_, _, bn) in hidden:
        gamma, beta, mean, var = bn[0], bn[1], bn[2], bn[3]
        s = gamma * jax.lax.rsqrt(var + BN_EPS)
        scales.append(s)
        shifts.append(beta - mean * s)

    # Layer 1 has no preceding BN; BN_i folds into Linear_{i+1}.
    fused_w = [ws[0]]
    fused_b = [bs[0]]
    for i in range(1, N_LAYERS):
        fused_w.append(ws[i] * scales[i - 1][:, None])
        fused_b.append(bs[i] + shifts[i - 1][None, :] @ ws[i])

    dims = tuple(int(w.shape[0]) for w in ws) + (int(ws[-1].shape[1]),)
    assert all(d <= LANE for d in dims), "packed layout assumes all dims <= 128"

    w_packed = jnp.zeros((N_LAYERS, LANE, LANE), jnp.bfloat16)
    b_packed = jnp.zeros((N_LAYERS + 1, LANE), jnp.float32)   # pad to 8 sublanes
    for i, (w, b) in enumerate(zip(fused_w, fused_b)):
        fi, fo = w.shape
        w_packed = w_packed.at[i, :fi, :fo].set(w.astype(jnp.bfloat16))
        b_packed = b_packed.at[i, :fo].set(b.reshape(-1).astype(jnp.float32))
    return w_packed, b_packed, dims


# ---------------------------------------------------------------------------
# Wrapper: batch grid, resident packed weights, real-width input & output.
# ---------------------------------------------------------------------------
@functools.partial(jax.jit, static_argnames=("dims", "batch_tile"))
def mlp_forward(x, w_packed, b_packed, *, dims, batch_tile=2048):
    B, F = x.shape
    n_out = dims[-1]

    # Sublane-aligned feature count so the in-kernel W1 row-slice is aligned.
    F_k = _round_up(F, 16)

    # Batch tile: multiple of 16 (bf16 sublane pack); cap at ceil(B/2) so the
    # grid has >= 2 steps and both v7x TensorCores get work.
    tb = min(batch_tile, _round_up(pl.cdiv(B, 2), 16))
    tb = max(tb, 16)
    B_pad = _round_up(B, tb)
    grid = (B_pad // tb,)

    if (B_pad, F_k) != (B, F):
        x_in = jnp.zeros((B_pad, F_k), x.dtype).at[:B, :F].set(x)
    else:
        x_in = x

    # Real (unpadded) work for the XLA scheduler.
    flops = 2 * B * sum(dims[i] * dims[i + 1] for i in range(N_LAYERS))
    bytes_accessed = (B * F * x.dtype.itemsize + B * n_out * 4
                      + w_packed.size * 2 + b_packed.size * 4)
    cost = pl.CostEstimate(flops=int(flops), transcendentals=0,
                           bytes_accessed=int(bytes_accessed))

    out = pl.pallas_call(
        mlp_kernel,
        out_shape=jax.ShapeDtypeStruct((B_pad, n_out), jnp.float32),
        grid=grid,
        in_specs=[
            pl.BlockSpec((tb, F_k), lambda i: (i, 0)),
            pl.BlockSpec((N_LAYERS, LANE, LANE), lambda i: (0, 0, 0)),
            pl.BlockSpec((N_LAYERS + 1, LANE), lambda i: (0, 0)),
        ],
        out_specs=pl.BlockSpec((tb, n_out), lambda i: (i, 0)),
        compiler_params=pltpu.CompilerParams(
            dimension_semantics=("parallel",)),
        cost_estimate=cost,
    )(x_in, w_packed, b_packed)

    return out[:B, :]


# ---------------------------------------------------------------------------
# Deterministic synthetic params + pure-JAX reference (unfused, eval-mode BN).
# ---------------------------------------------------------------------------
def init_params(key, n_feature, n_hidden, n_output):
    dims = [n_feature, n_hidden, n_hidden * 2, n_hidden,
            n_hidden // 2, n_hidden // 4, n_hidden // 8, n_output]

    hidden = []
    for i in range(6):
        fan_in, fan_out = dims[i], dims[i + 1]
        key, k_w, k_b, k_g, k_be, k_m, k_v = jax.random.split(key, 7)
        bound = 1.0 / (fan_in ** 0.5)
        w = jax.random.uniform(k_w, (fan_in, fan_out), jnp.float32, -bound, bound)
        b = jax.random.uniform(k_b, (1, fan_out), jnp.float32, -bound, bound)
        # Non-trivial eval-mode BN statistics (exercises the BN-fold path).
        gamma = jax.random.uniform(k_g, (fan_out,), jnp.float32, 0.5, 1.5)
        beta = 0.1 * jax.random.normal(k_be, (fan_out,), jnp.float32)
        mean = 0.1 * jax.random.normal(k_m, (fan_out,), jnp.float32)
        var = jax.random.uniform(k_v, (fan_out,), jnp.float32, 0.5, 1.5)
        bn = jnp.stack([gamma, beta, mean, var])
        hidden.append((w, b, bn))

    fan_in, fan_out = dims[6], dims[7]
    key, k_w, k_b = jax.random.split(key, 3)
    bound = 1.0 / (fan_in ** 0.5)
    final_w = jax.random.uniform(k_w, (fan_in, fan_out), jnp.float32, -bound, bound)
    final_b = jax.random.uniform(k_b, (1, fan_out), jnp.float32, -bound, bound)

    return {"hidden": hidden, "final_w": final_w, "final_b": final_b}


def mlp_reference(x, params):
    """Pure-JAX reference: Linear -> ReLU -> BN(eval) per block, then Linear."""
    h = x
    for (w, b, bn) in params["hidden"]:
        h = jnp.maximum(h @ w + b, 0.0)
        gamma, beta, mean, var = bn[0:1], bn[1:2], bn[2:3], bn[3:4]
        h = (h - mean) * jax.lax.rsqrt(var + BN_EPS) * gamma + beta
    return h @ params["final_w"] + params["final_b"]


if __name__ == "__main__":
    batch = 8
    n_feature = 16
    n_hidden = 32
    n_output = 1

    key = jax.random.PRNGKey(0)
    key, k_x, k_p = jax.random.split(key, 3)
    x = jax.random.normal(k_x, (batch, n_feature), jnp.float32)
    params = init_params(k_p, n_feature, n_hidden, n_output)

    # Fold/pack once per model (hoisted out of the per-call path).
    w_packed, b_packed, dims = prepare_params(params)
    w_packed, b_packed = jax.block_until_ready((w_packed, b_packed))

    out = mlp_forward(x, w_packed, b_packed, dims=dims)
    out = jax.block_until_ready(out)

    ref = mlp_reference(x, params)
    assert out.shape == (batch, n_output)
    # bf16 matmul datapath with f32 accumulation -> slightly looser tolerance.
    assert jnp.allclose(out, ref, atol=5e-2, rtol=5e-2), float(
        jnp.max(jnp.abs(out - ref)))

    print("KERNEL_OK")
</pallas_src>

<mosaic_0001>
module attributes {stable_mosaic.version = 11 : i64} {
  func.func @mlp_kernel(%arg0: i32, %arg1: memref<16x16xf32, #tpu.memory_space<vmem>>, %arg2: memref<7x128x128xbf16, #tpu.memory_space<vmem>>, %arg3: memref<8x128xf32, #tpu.memory_space<vmem>>, %arg4: memref<16x1xf32, #tpu.memory_space<vmem>>) attributes {dimension_semantics = [#tpu.dimension_semantics<parallel>], iteration_bounds = array<i64: 1>, scalar_prefetch = 0 : i64, scratch_operands = 0 : i64, tpu.core_type = #tpu.core_type<tc>, window_params = [{transform_indices = @transform_0, window_bounds = array<i64: 16, 16>}, {pipeline_mode = #tpu.pipeline_mode<synchronous>, transform_indices = @transform_1, window_bounds = array<i64: 7, 128, 128>}, {pipeline_mode = #tpu.pipeline_mode<synchronous>, transform_indices = @transform_2, window_bounds = array<i64: 8, 128>}, {transform_indices = @transform_3, window_bounds = array<i64: 16, 1>}]} {
    %c0 = arith.constant 0 : index
    %c0_0 = arith.constant 0 : index
    %0 = vector.load %arg1[%c0, %c0_0] : memref<16x16xf32, #tpu.memory_space<vmem>>, vector<16x16xf32>
    %1 = arith.truncf %0 : vector<16x16xf32> to vector<16x16xbf16>
    %c0_1 = arith.constant 0 : index
    %c0_2 = arith.constant 0 : index
    %c0_3 = arith.constant 0 : index
    %2 = vector.load %arg2[%c0_1, %c0_2, %c0_3] : memref<7x128x128xbf16, #tpu.memory_space<vmem>>, vector<1x16x128xbf16>
    %3 = vector.shape_cast %2 : vector<1x16x128xbf16> to vector<16x128xbf16>
    %cst = arith.constant dense<0.000000e+00> : vector<16x128xf32>
    %4 = tpu.matmul %1, %3, %cst {dimension_numbers = #tpu.dot_dimension_numbers<[1], [0], [0], [1], [0, 0, 1, 1], [], []>} : vector<16x16xbf16>, vector<16x128xbf16>, vector<16x128xf32> -> vector<16x128xf32>
    %c0_4 = arith.constant 0 : index
    %c0_5 = arith.constant 0 : index
    %5 = vector.load %arg3[%c0_4, %c0_5] : memref<8x128xf32, #tpu.memory_space<vmem>>, vector<1x128xf32>
    %6 = vector.broadcast %5 : vector<1x128xf32> to vector<16x128xf32>
    %7 = arith.addf %4, %6 : vector<16x128xf32>
    %cst_6 = arith.constant 0.000000e+00 : f32
    %8 = vector.broadcast %cst_6 : f32 to vector<16x128xf32>
    %9 = arith.maximumf %7, %8 : vector<16x128xf32>
    %10 = arith.truncf %9 : vector<16x128xf32> to vector<16x128xbf16>
    %c1 = arith.constant 1 : index
    %c0_7 = arith.constant 0 : index
    %c0_8 = arith.constant 0 : index
    %11 = vector.load %arg2[%c1, %c0_7, %c0_8] : memref<7x128x128xbf16, #tpu.memory_space<vmem>>, vector<1x128x128xbf16>
    %12 = vector.shape_cast %11 : vector<1x128x128xbf16> to vector<128x128xbf16>
    %cst_9 = arith.constant dense<0.000000e+00> : vector<16x128xf32>
    %13 = tpu.matmul %10, %12, %cst_9 {dimension_numbers = #tpu.dot_dimension_numbers<[1], [0], [0], [1], [0, 0, 1, 1], [], []>} : vector<16x128xbf16>, vector<128x128xbf16>, vector<16x128xf32> -> vector<16x128xf32>
    %c1_10 = arith.constant 1 : index
    %c0_11 = arith.constant 0 : index
    %14 = vector.load %arg3[%c1_10, %c0_11] : memref<8x128xf32, #tpu.memory_space<vmem>>, vector<1x128xf32>
    %15 = vector.broadcast %14 : vector<1x128xf32> to vector<16x128xf32>
    %16 = arith.addf %13, %15 : vector<16x128xf32>
    %cst_12 = arith.constant 0.000000e+00 : f32
    %17 = vector.broadcast %cst_12 : f32 to vector<16x128xf32>
    %18 = arith.maximumf %16, %17 : vector<16x128xf32>
    %19 = arith.truncf %18 : vector<16x128xf32> to vector<16x128xbf16>
    %c2 = arith.constant 2 : index
    %c0_13 = arith.constant 0 : index
    %c0_14 = arith.constant 0 : index
    %20 = vector.load %arg2[%c2, %c0_13, %c0_14] : memref<7x128x128xbf16, #tpu.memory_space<vmem>>, vector<1x128x128xbf16>
    %21 = vector.shape_cast %20 : vector<1x128x128xbf16> to vector<128x128xbf16>
    %cst_15 = arith.constant dense<0.000000e+00> : vector<16x128xf32>
    %22 = tpu.matmul %19, %21, %cst_15 {dimension_numbers = #tpu.dot_dimension_numbers<[1], [0], [0], [1], [0, 0, 1, 1], [], []>} : vector<16x128xbf16>, vector<128x128xbf16>, vector<16x128xf32> -> vector<16x128xf32>
    %c2_16 = arith.constant 2 : index
    %c0_17 = arith.constant 0 : index
    %23 = vector.load %arg3[%c2_16, %c0_17] : memref<8x128xf32, #tpu.memory_space<vmem>>, vector<1x128xf32>
    %24 = vector.broadcast %23 : vector<1x128xf32> to vector<16x128xf32>
    %25 = arith.addf %22, %24 : vector<16x128xf32>
    %cst_18 = arith.constant 0.000000e+00 : f32
    %26 = vector.broadcast %cst_18 : f32 to vector<16x128xf32>
    %27 = arith.maximumf %25, %26 : vector<16x128xf32>
    %28 = arith.truncf %27 : vector<16x128xf32> to vector<16x128xbf16>
    %c3 = arith.constant 3 : index
    %c0_19 = arith.constant 0 : index
    %c0_20 = arith.constant 0 : index
    %29 = vector.load %arg2[%c3, %c0_19, %c0_20] : memref<7x128x128xbf16, #tpu.memory_space<vmem>>, vector<1x128x128xbf16>
    %30 = vector.shape_cast %29 : vector<1x128x128xbf16> to vector<128x128xbf16>
    %cst_21 = arith.constant dense<0.000000e+00> : vector<16x128xf32>
    %31 = tpu.matmul %28, %30, %cst_21 {dimension_numbers = #tpu.dot_dimension_numbers<[1], [0], [0], [1], [0, 0, 1, 1], [], []>} : vector<16x128xbf16>, vector<128x128xbf16>, vector<16x128xf32> -> vector<16x128xf32>
    %c3_22 = arith.constant 3 : index
    %c0_23 = arith.constant 0 : index
    %32 = vector.load %arg3[%c3_22, %c0_23] : memref<8x128xf32, #tpu.memory_space<vmem>>, vector<1x128xf32>
    %33 = vector.broadcast %32 : vector<1x128xf32> to vector<16x128xf32>
    %34 = arith.addf %31, %33 : vector<16x128xf32>
    %cst_24 = arith.constant 0.000000e+00 : f32
    %35 = vector.broadcast %cst_24 : f32 to vector<16x128xf32>
    %36 = arith.maximumf %34, %35 : vector<16x128xf32>
    %37 = arith.truncf %36 : vector<16x128xf32> to vector<16x128xbf16>
    %c4 = arith.constant 4 : index
    %c0_25 = arith.constant 0 : index
    %c0_26 = arith.constant 0 : index
    %38 = vector.load %arg2[%c4, %c0_25, %c0_26] : memref<7x128x128xbf16, #tpu.memory_space<vmem>>, vector<1x128x128xbf16>
    %39 = vector.shape_cast %38 : vector<1x128x128xbf16> to vector<128x128xbf16>
    %cst_27 = arith.constant dense<0.000000e+00> : vector<16x128xf32>
    %40 = tpu.matmul %37, %39, %cst_27 {dimension_numbers = #tpu.dot_dimension_numbers<[1], [0], [0], [1], [0, 0, 1, 1], [], []>} : vector<16x128xbf16>, vector<128x128xbf16>, vector<16x128xf32> -> vector<16x128xf32>
    %c4_28 = arith.constant 4 : index
    %c0_29 = arith.constant 0 : index
    %41 = vector.load %arg3[%c4_28, %c0_29] : memref<8x128xf32, #tpu.memory_space<vmem>>, vector<1x128xf32>
    %42 = vector.broadcast %41 : vector<1x128xf32> to vector<16x128xf32>
    %43 = arith.addf %40, %42 : vector<16x128xf32>
    %cst_30 = arith.constant 0.000000e+00 : f32
    %44 = vector.broadcast %cst_30 : f32 to vector<16x128xf32>
    %45 = arith.maximumf %43, %44 : vector<16x128xf32>
    %46 = arith.truncf %45 : vector<16x128xf32> to vector<16x128xbf16>
    %c5 = arith.constant 5 : index
    %c0_31 = arith.constant 0 : index
    %c0_32 = arith.constant 0 : index
    %47 = vector.load %arg2[%c5, %c0_31, %c0_32] : memref<7x128x128xbf16, #tpu.memory_space<vmem>>, vector<1x128x128xbf16>
    %48 = vector.shape_cast %47 : vector<1x128x128xbf16> to vector<128x128xbf16>
    %cst_33 = arith.constant dense<0.000000e+00> : vector<16x128xf32>
    %49 = tpu.matmul %46, %48, %cst_33 {dimension_numbers = #tpu.dot_dimension_numbers<[1], [0], [0], [1], [0, 0, 1, 1], [], []>} : vector<16x128xbf16>, vector<128x128xbf16>, vector<16x128xf32> -> vector<16x128xf32>
    %c5_34 = arith.constant 5 : index
    %c0_35 = arith.constant 0 : index
    %50 = vector.load %arg3[%c5_34, %c0_35] : memref<8x128xf32, #tpu.memory_space<vmem>>, vector<1x128xf32>
    %51 = vector.broadcast %50 : vector<1x128xf32> to vector<16x128xf32>
    %52 = arith.addf %49, %51 : vector<16x128xf32>
    %cst_36 = arith.constant 0.000000e+00 : f32
    %53 = vector.broadcast %cst_36 : f32 to vector<16x128xf32>
    %54 = arith.maximumf %52, %53 : vector<16x128xf32>
    %55 = arith.truncf %54 : vector<16x128xf32> to vector<16x128xbf16>
    %c6 = arith.constant 6 : index
    %c0_37 = arith.constant 0 : index
    %c0_38 = arith.constant 0 : index
    %56 = vector.load %arg2[%c6, %c0_37, %c0_38] : memref<7x128x128xbf16, #tpu.memory_space<vmem>>, vector<1x128x128xbf16>
    %57 = vector.shape_cast %56 : vector<1x128x128xbf16> to vector<128x128xbf16>
    %cst_39 = arith.constant dense<0.000000e+00> : vector<16x128xf32>
    %58 = tpu.matmul %55, %57, %cst_39 {dimension_numbers = #tpu.dot_dimension_numbers<[1], [0], [0], [1], [0, 0, 1, 1], [], []>} : vector<16x128xbf16>, vector<128x128xbf16>, vector<16x128xf32> -> vector<16x128xf32>
    %c6_40 = arith.constant 6 : index
    %c0_41 = arith.constant 0 : index
    %59 = vector.load %arg3[%c6_40, %c0_41] : memref<8x128xf32, #tpu.memory_space<vmem>>, vector<1x128xf32>
    %60 = vector.broadcast %59 : vector<1x128xf32> to vector<16x128xf32>
    %61 = arith.addf %58, %60 : vector<16x128xf32>
    %62 = vector.extract_strided_slice %61 {offsets = [0, 0], sizes = [16, 1], strides = [1, 1]} : vector<16x128xf32> to vector<16x1xf32>
    %c0_42 = arith.constant 0 : index
    %c0_43 = arith.constant 0 : index
    %63 = vector.load %arg4[%c0_42, %c0_43] : memref<16x1xf32, #tpu.memory_space<vmem>>, vector<16x1xf32>
    tpu.vector_store %arg4[%c0_42, %c0_43], %62 {strides = array<i32>} : memref<16x1xf32, #tpu.memory_space<vmem>>, vector<16x1xf32>,
    return
  }
  func.func @transform_0(%arg0: i32) -> (i32, i32) {
    %c0_i32 = arith.constant 0 : i32
    %c0_i32_0 = arith.constant 0 : i32
    return %arg0, %c0_i32 : i32, i32
  }
  func.func @transform_1(%arg0: i32) -> (i32, i32, i32) {
    %c0_i32 = arith.constant 0 : i32
    %c0_i32_0 = arith.constant 0 : i32
    %c0_i32_1 = arith.constant 0 : i32
    %c0_i32_2 = arith.constant 0 : i32
    return %c0_i32, %c0_i32_0, %c0_i32_1 : i32, i32, i32
  }
  func.func @transform_2(%arg0: i32) -> (i32, i32) {
    %c0_i32 = arith.constant 0 : i32
    %c0_i32_0 = arith.constant 0 : i32
    %c0_i32_1 = arith.constant 0 : i32
    return %c0_i32, %c0_i32_0 : i32, i32
  }
  func.func @transform_3(%arg0: i32) -> (i32, i32) {
    %c0_i32 = arith.constant 0 : i32
    %c0_i32_0 = arith.constant 0 : i32
    return %arg0, %c0_i32 : i32, i32
  }
}

</mosaic_0001>

<llo_original>
// kernel: mlp_forward.1
$region0: #{mlp_forward.1}
  #allocation0 [shape = 'u32[]', space=smem, size = 0x4, offset = 0x4, fixed_abs, tag = 'smem constant byte address 0x4 - core index']
  #allocation1 [shape = 'u32[144,128]{1,0:T(1,128)}', space=vmem, size = 0x12000, scoped, tag = 'internal scratch']
  %s0 = inlined_call_operand.vmem [shape: f32[16,16], index: 0, kind: input, shape index: {}]
  %s1 = inlined_call_operand.hbm [shape: bf16[7,128,128], index: 1, kind: input, shape index: {}]
  %s2 = inlined_call_operand.vmem [shape: f32[8,128], index: 2, kind: input, shape index: {}]
  %s3 = inlined_call_operand.vmem [shape: f32[16,1], index: 3, kind: output, shape index: {}]
  %s4 = sld [smem:[#allocation0]]
  $region26: #{mlp_forward.1} parent=0
    _
  %s6 = ssub.s32 1, %s4
  %s7 = scalar_select 0, %s6, %s4
  $region1: #{mlp_forward.1} parent=0
    #allocation2 [shape = 'u8[229376]{0}', space=vmem, size = 0x38000, scoped, tag = 'input window, operand 1, single buffered']
    #allocation3 [shape = 's32[1]{0}', space=sflag, size = 0x4, scoped, tag = 'scoped memory for mlp_forward.1']
    %8 = vsyncpa [#allocation3], 0
    // Predicated region
    $region2: #{mlp_forward.1} parent=1 // pred_check
      _
    $region3: #{mlp_forward.1} parent=1 // pred_check_branch
      %10 = sbr.rel (0) target = $region5
    $region4: #{mlp_forward.1} parent=1 // pred_region
      _
    $region5: #{mlp_forward.1} parent=1 // pred_fallthru
      _
    // Predicated region
    $region6: #{mlp_forward.1} parent=1 // pred_check
      _
    $region7: #{mlp_forward.1} parent=1 // pred_check_branch
      %12 = sbr.rel (0) target = $region9
    $region8: #{mlp_forward.1} parent=1 // pred_region
      %s14 = ssub.s32 7168, 7168
      %15 = vsyncadd [#allocation3], %s14
      %s16 = sshll.u32 [#allocation2], 4
      %s17 = int_to_ptr.vmem [resolvable:$true] %s16
      %22 = dma.hbm_to_vmem [thread:$0]  %s1, 7168, %s17, [#allocation3], 64, 64, 4
    $region9: #{mlp_forward.1} parent=1 // pred_fallthru
      _
    // Predicated region
    $region10: #{mlp_forward.1} parent=1 // pred_check
      _
    $region11: #{mlp_forward.1} parent=1 // pred_check_branch
      %24 = sbr.rel (0) target = $region13
    $region12: #{mlp_forward.1} parent=1 // pred_region
      _
    $region13: #{mlp_forward.1} parent=1 // pred_fallthru
      _
    // Predicated region
    $region14: #{mlp_forward.1} parent=1 // pred_check
      _
    $region15: #{mlp_forward.1} parent=1 // pred_check_branch
      %26 = sbr.rel (0) target = $region17
    $region16: #{mlp_forward.1} parent=1 // pred_region
      %27 = dma.done [#allocation3], 7168
    $region17: #{mlp_forward.1} parent=1 // pred_fallthru
      _
    %v29 = vld [vmem:[%s0] sm:$0xff]
    %v30 = vld [vmem:[%s0 + $0x8] sm:$0xff]
    %v31 = vpack.c.bf16 %v30, %v29
    %v32 = vld [vmem:[#allocation2] sm:$0xf]
    %v33 = vld [vmem:[#allocation2 + $0x4] sm:$0xf]
    %v34 = vld [vmem:[%s2] sm:$0x1]
    %v35 = vlaneseq
    %v36 = vshrl.u32 %v35, 7
    %v37 = vsub.s32 0, %v36
    %v38 = vrot.slane %v34, %v37
    %v41 = vunpack.c.l.b16 %v32
    %v42 = vunpack.c.l.b16 %v33
    %v43 = vpack.c.b16 %v42, %v41
    %vm45 = vcmask 130048
    %v47 = vsel %vm45, %v31, 0
    %49 = vmatprep.subr.bf16.mxu0 0
    %50 = vmatpush1.bf16.msra.mxu0 %v43
    %51 = vmatprep.subr.bf16.mxu0 0
    %52 = vmatpush1.bf16.msra.mxu0 0
    %53 = vmatprep.subr.bf16.mxu0 0
    %54 = vmatpush1.bf16.msra.mxu0 0
    %55 = vmatprep.subr.bf16.mxu0 0
    %56 = vmatpush1.bf16.msra.mxu0 0
    %57 = vmatprep.subr.bf16.mxu0 0
    %58 = vmatpush1.bf16.msra.mxu0 0
    %59 = vmatprep.subr.bf16.mxu0 0
    %60 = vmatpush1.bf16.msra.mxu0 0
    %61 = vmatprep.subr.bf16.mxu0 0
    %62 = vmatpush1.bf16.msra.mxu0 0
    %63 = vmatprep.subr.bf16.mxu0 0
    %64 = vmatpush1.bf16.msra.mxu0 0
    %65 = vmatprep.subr.bf16.mxu0 0
    %66 = vmatpush1.bf16.msra.mxu0 0
    %67 = vmatprep.subr.bf16.mxu0 0
    %68 = vmatpush1.bf16.msra.mxu0 0
    %69 = vmatprep.subr.bf16.mxu0 0
    %70 = vmatpush1.bf16.msra.mxu0 0
    %71 = vmatprep.subr.bf16.mxu0 0
    %72 = vmatpush1.bf16.msra.mxu0 0
    %73 = vmatprep.subr.bf16.mxu0 0
    %74 = vmatpush1.bf16.msra.mxu0 0
    %75 = vmatprep.subr.bf16.mxu0 0
    %76 = vmatpush1.bf16.msra.mxu0 0
    %77 = vmatprep.subr.bf16.mxu0 0
    %78 = vmatpush1.bf16.msra.mxu0 0
    %79 = vmatprep.subr.bf16.mxu0 0
    %80 = vmatpush1.bf16.msra.mxu0 0
    %81 = vmatprep.mubr.bf16.mxu0 0
    %82 = vmatmul.mubr.bf16.gmra.mrb[0].mxu0 %v47
    %v83 = vpop.f32.mrb[0].mxu0
    %v84 = vadd.f32 %v38, %v83
    %v85 = vpop.f32.mrb[0].mxu0
    %v86 = vpop.f32.mrb[0].mxu0
    %v87 = vadd.f32 %v38, %v86
    %v88 = vpop.f32.mrb[0].mxu0
    %89 = vdwg.mxu0
    %v90 = vmax.f32 %v84, 0.0
    %v91 = vmax.f32 %v87, 0.0
    %v92 = vpack.c.bf16 %v91, %v90
    %s93 = scalar_lea.vmem [#allocation2], 64
    %v94 = vld [vmem:[%s93] sm:$0xf]
    %v95 = vld [vmem:[%s93 + $0x4] sm:$0xf]
    %v96 = vld [vmem:[%s93 + $0x8] sm:$0xf]
    %v97 = vld [vmem:[%s93 + $0xc] sm:$0xf]
    %v98 = vld [vmem:[%s93 + $0x10] sm:$0xf]
    %v99 = vld [vmem:[%s93 + $0x14] sm:$0xf]
    %v100 = vld [vmem:[%s93 + $0x18] sm:$0xf]
    %v101 = vld [vmem:[%s93 + $0x1c] sm:$0xf]
    %v102 = vld [vmem:[%s93 + $0x20] sm:$0xf]
    %v103 = vld [vmem:[%s93 + $0x24] sm:$0xf]
    %v104 = vld [vmem:[%s93 + $0x28] sm:$0xf]
    %v105 = vld [vmem:[%s93 + $0x2c] sm:$0xf]
    %v106 = vld [vmem:[%s93 + $0x30] sm:$0xf]
    %v107 = vld [vmem:[%s93 + $0x34] sm:$0xf]
    %v108 = vld [vmem:[%s93 + $0x38] sm:$0xf]
    %v109 = vld [vmem:[%s93 + $0x3c] sm:$0xf]
    %v110 = vld [vmem:[%s2 + $0x1] sm:$0x1]
    %v111 = vlaneseq
    %v112 = vshrl.u32 %v111, 7
    %v113 = vsub.s32 0, %v112
    %v114 = vrot.slane %v110, %v113
    %v131 = vunpack.c.l.b16 %v94
    %v132 = vunpack.c.l.b16 %v95
    %v133 = vunpack.c.l.b16 %v96
    %v134 = vunpack.c.l.b16 %v97
    %v135 = vunpack.c.l.b16 %v98
    %v136 = vunpack.c.l.b16 %v99
    %v137 = vunpack.c.l.b16 %v100
    %v138 = vunpack.c.l.b16 %v101
    %v139 = vunpack.c.l.b16 %v102
    %v140 = vunpack.c.l.b16 %v103
    %v141 = vunpack.c.l.b16 %v104
    %v142 = vunpack.c.l.b16 %v105
    %v143 = vunpack.c.l.b16 %v106
    %v144 = vunpack.c.l.b16 %v107
    %v145 = vunpack.c.l.b16 %v108
    %v146 = vunpack.c.l.b16 %v109
    %v147 = vpack.c.b16 %v132, %v131
    %v148 = vpack.c.b16 %v134, %v133
    %v149 = vpack.c.b16 %v136, %v135
    %v150 = vpack.c.b16 %v138, %v137
    %v151 = vpack.c.b16 %v140, %v139
    %v152 = vpack.c.b16 %v142, %v141
    %v153 = vpack.c.b16 %v144, %v143
    %v154 = vpack.c.b16 %v146, %v145
    %163 = vmatprep.subr.bf16.mxu0 0
    %164 = vmatpush1.bf16.msra.mxu0 %v147
    %165 = vmatprep.subr.bf16.mxu0 0
    %166 = vmatpush1.bf16.msra.mxu0 %v148
    %167 = vmatprep.subr.bf16.mxu0 0
    %168 = vmatpush1.bf16.msra.mxu0 %v149
    %169 = vmatprep.subr.bf16.mxu0 0
    %170 = vmatpush1.bf16.msra.mxu0 %v150
    %171 = vmatprep.subr.bf16.mxu0 0
    %172 = vmatpush1.bf16.msra.mxu0 %v151
    %173 = vmatprep.subr.bf16.mxu0 0
    %174 = vmatpush1.bf16.msra.mxu0 %v152
    %175 = vmatprep.subr.bf16.mxu0 0
    %176 = vmatpush1.bf16.msra.mxu0 %v153
    %177 = vmatprep.subr.bf16.mxu0 0
    %178 = vmatpush1.bf16.msra.mxu0 %v154
    %179 = vmatprep.subr.bf16.mxu0 0
    %180 = vmatpush1.bf16.msra.mxu0 0
    %181 = vmatprep.subr.bf16.mxu0 0
    %182 = vmatpush1.bf16.msra.mxu0 0
    %183 = vmatprep.subr.bf16.mxu0 0
    %184 = vmatpush1.bf16.msra.mxu0 0
    %185 = vmatprep.subr.bf16.mxu0 0
    %186 = vmatpush1.bf16.msra.mxu0 0
    %187 = vmatprep.subr.bf16.mxu0 0
    %188 = vmatpush1.bf16.msra.mxu0 0
    %189 = vmatprep.subr.bf16.mxu0 0
    %190 = vmatpush1.bf16.msra.mxu0 0
    %191 = vmatprep.subr.bf16.mxu0 0
    %192 = vmatpush1.bf16.msra.mxu0 0
    %193 = vmatprep.subr.bf16.mxu0 0
    %194 = vmatpush1.bf16.msra.mxu0 0
    %195 = vmatprep.mubr.bf16.mxu0 0
    %196 = vmatmul.mubr.bf16.gmra.mrb[0].mxu0 %v92
    %v197 = vpop.f32.mrb[0].mxu0
    %v198 = vadd.f32 %v114, %v197
    %v199 = vpop.f32.mrb[0].mxu0
    %v200 = vpop.f32.mrb[0].mxu0
    %v201 = vadd.f32 %v114, %v200
    %v202 = vpop.f32.mrb[0].mxu0
    %203 = vdwg.mxu0
    %v204 = vmax.f32 %v198, 0.0
    %v205 = vmax.f32 %v201, 0.0
    %v206 = vpack.c.bf16 %v205, %v204
    %s207 = scalar_lea.vmem [#allocation2], 128
    %v208 = vld [vmem:[%s207] sm:$0xf]
    %v209 = vld [vmem:[%s207 + $0x4] sm:$0xf]
    %v210 = vld [vmem:[%s207 + $0x8] sm:$0xf]
    %v211 = vld [vmem:[%s207 + $0xc] sm:$0xf]
    %v212 = vld [vmem:[%s207 + $0x10] sm:$0xf]
    %v213 = vld [vmem:[%s207 + $0x14] sm:$0xf]
    %v214 = vld [vmem:[%s207 + $0x18] sm:$0xf]
    %v215 = vld [vmem:[%s207 + $0x1c] sm:$0xf]
    %v216 = vld [vmem:[%s207 + $0x20] sm:$0xf]
    %v217 = vld [vmem:[%s207 + $0x24] sm:$0xf]
    %v218 = vld [vmem:[%s207 + $0x28] sm:$0xf]
    %v219 = vld [vmem:[%s207 + $0x2c] sm:$0xf]
    %v220 = vld [vmem:[%s207 + $0x30] sm:$0xf]
    %v221 = vld [vmem:[%s207 + $0x34] sm:$0xf]
    %v222 = vld [vmem:[%s207 + $0x38] sm:$0xf]
    %v223 = vld [vmem:[%s207 + $0x3c] sm:$0xf]
    %v224 = vld [vmem:[%s2 + $0x2] sm:$0x1]
    %v225 = vlaneseq
    %v226 = vshrl.u32 %v225, 7
    %v227 = vsub.s32 0, %v226
    %v228 = vrot.slane %v224, %v227
    %v245 = vunpack.c.l.b16 %v208
    %v246 = vunpack.c.l.b16 %v209
    %v247 = vunpack.c.l.b16 %v210
    %v248 = vunpack.c.l.b16 %v211
    %v249 = vunpack.c.l.b16 %v212
    %v250 = vunpack.c.l.b16 %v213
    %v251 = vunpack.c.l.b16 %v214
    %v252 = vunpack.c.l.b16 %v215
    %v253 = vunpack.c.l.b16 %v216
    %v254 = vunpack.c.l.b16 %v217
    %v255 = vunpack.c.l.b16 %v218
    %v256 = vunpack.c.l.b16 %v219
    %v257 = vunpack.c.l.b16 %v220
    %v258 = vunpack.c.l.b16 %v221
    %v259 = vunpack.c.l.b16 %v222
    %v260 = vunpack.c.l.b16 %v223
    %v261 = vpack.c.b16 %v246, %v245
    %v262 = vpack.c.b16 %v248, %v247
    %v263 = vpack.c.b16 %v250, %v249
    %v264 = vpack.c.b16 %v252, %v251
    %v265 = vpack.c.b16 %v254, %v253
    %v266 = vpack.c.b16 %v256, %v255
    %v267 = vpack.c.b16 %v258, %v257
    %v268 = vpack.c.b16 %v260, %v259
    %277 = vmatprep.subr.bf16.mxu0 0
    %278 = vmatpush1.bf16.msra.mxu0 %v261
    %279 = vmatprep.subr.bf16.mxu0 0
    %280 = vmatpush1.bf16.msra.mxu0 %v262
    %281 = vmatprep.subr.bf16.mxu0 0
    %282 = vmatpush1.bf16.msra.mxu0 %v263
    %283 = vmatprep.subr.bf16.mxu0 0
    %284 = vmatpush1.bf16.msra.mxu0 %v264
    %285 = vmatprep.subr.bf16.mxu0 0
    %286 = vmatpush1.bf16.msra.mxu0 %v265
    %287 = vmatprep.subr.bf16.mxu0 0
    %288 = vmatpush1.bf16.msra.mxu0 %v266
    %289 = vmatprep.subr.bf16.mxu0 0
    %290 = vmatpush1.bf16.msra.mxu0 %v267
    %291 = vmatprep.subr.bf16.mxu0 0
    %292 = vmatpush1.bf16.msra.mxu0 %v268
    %293 = vmatprep.subr.bf16.mxu0 0
    %294 = vmatpush1.bf16.msra.mxu0 0
    %295 = vmatprep.subr.bf16.mxu0 0
    %296 = vmatpush1.bf16.msra.mxu0 0
    %297 = vmatprep.subr.bf16.mxu0 0
    %298 = vmatpush1.bf16.msra.mxu0 0
    %299 = vmatprep.subr.bf16.mxu0 0
    %300 = vmatpush1.bf16.msra.mxu0 0
    %301 = vmatprep.subr.bf16.mxu0 0
    %302 = vmatpush1.bf16.msra.mxu0 0
    %303 = vmatprep.subr.bf16.mxu0 0
    %304 = vmatpush1.bf16.msra.mxu0 0
    %305 = vmatprep.subr.bf16.mxu0 0
    %306 = vmatpush1.bf16.msra.mxu0 0
    %307 = vmatprep.subr.bf16.mxu0 0
    %308 = vmatpush1.bf16.msra.mxu0 0
    %309 = vmatprep.mubr.bf16.mxu0 0
    %310 = vmatmul.mubr.bf16.gmra.mrb[0].mxu0 %v206
    %v311 = vpop.f32.mrb[0].mxu0
    %v312 = vadd.f32 %v228, %v311
    %v313 = vpop.f32.mrb[0].mxu0
    %v314 = vpop.f32.mrb[0].mxu0
    %v315 = vadd.f32 %v228, %v314
    %v316 = vpop.f32.mrb[0].mxu0
    %317 = vdwg.mxu0
    %v318 = vmax.f32 %v312, 0.0
    %v319 = vmax.f32 %v315, 0.0
    %v320 = vpack.c.bf16 %v319, %v318
    %s321 = scalar_lea.vmem [#allocation2], 192
    %v322 = vld [vmem:[%s321] sm:$0xf]
    %v323 = vld [vmem:[%s321 + $0x4] sm:$0xf]
    %v324 = vld [vmem:[%s321 + $0x8] sm:$0xf]
    %v325 = vld [vmem:[%s321 + $0xc] sm:$0xf]
    %v326 = vld [vmem:[%s321 + $0x10] sm:$0xf]
    %v327 = vld [vmem:[%s321 + $0x14] sm:$0xf]
    %v328 = vld [vmem:[%s321 + $0x18] sm:$0xf]
    %v329 = vld [vmem:[%s321 + $0x1c] sm:$0xf]
    %v330 = vld [vmem:[%s321 + $0x20] sm:$0xf]
    %v331 = vld [vmem:[%s321 + $0x24] sm:$0xf]
    %v332 = vld [vmem:[%s321 + $0x28] sm:$0xf]
    %v333 = vld [vmem:[%s321 + $0x2c] sm:$0xf]
    %v334 = vld [vmem:[%s321 + $0x30] sm:$0xf]
    %v335 = vld [vmem:[%s321 + $0x34] sm:$0xf]
    %v336 = vld [vmem:[%s321 + $0x38] sm:$0xf]
    %v337 = vld [vmem:[%s321 + $0x3c] sm:$0xf]
    %v338 = vld [vmem:[%s2 + $0x3] sm:$0x1]
    %v339 = vlaneseq
    %v340 = vshrl.u32 %v339, 7
    %v341 = vsub.s32 0, %v340
    %v342 = vrot.slane %v338, %v341
    %v359 = vunpack.c.l.b16 %v322
    %v360 = vunpack.c.l.b16 %v323
    %v361 = vunpack.c.l.b16 %v324
    %v362 = vunpack.c.l.b16 %v325
    %v363 = vunpack.c.l.b16 %v326
    %v364 = vunpack.c.l.b16 %v327
    %v365 = vunpack.c.l.b16 %v328
    %v366 = vunpack.c.l.b16 %v329
    %v367 = vunpack.c.l.b16 %v330
    %v368 = vunpack.c.l.b16 %v331
    %v369 = vunpack.c.l.b16 %v332
    %v370 = vunpack.c.l.b16 %v333
    %v371 = vunpack.c.l.b16 %v334
    %v372 = vunpack.c.l.b16 %v335
    %v373 = vunpack.c.l.b16 %v336
    %v374 = vunpack.c.l.b16 %v337
    %v375 = vpack.c.b16 %v360, %v359
    %v376 = vpack.c.b16 %v362, %v361
    %v377 = vpack.c.b16 %v364, %v363
    %v378 = vpack.c.b16 %v366, %v365
    %v379 = vpack.c.b16 %v368, %v367
    %v380 = vpack.c.b16 %v370, %v369
    %v381 = vpack.c.b16 %v372, %v371
    %v382 = vpack.c.b16 %v374, %v373
    %391 = vmatprep.subr.bf16.mxu0 0
    %392 = vmatpush1.bf16.msra.mxu0 %v375
    %393 = vmatprep.subr.bf16.mxu0 0
    %394 = vmatpush1.bf16.msra.mxu0 %v376
    %395 = vmatprep.subr.bf16.mxu0 0
    %396 = vmatpush1.bf16.msra.mxu0 %v377
    %397 = vmatprep.subr.bf16.mxu0 0
    %398 = vmatpush1.bf16.msra.mxu0 %v378
    %399 = vmatprep.subr.bf16.mxu0 0
    %400 = vmatpush1.bf16.msra.mxu0 %v379
    %401 = vmatprep.subr.bf16.mxu0 0
    %402 = vmatpush1.bf16.msra.mxu0 %v380
    %403 = vmatprep.subr.bf16.mxu0 0
    %404 = vmatpush1.bf16.msra.mxu0 %v381
    %405 = vmatprep.subr.bf16.mxu0 0
    %406 = vmatpush1.bf16.msra.mxu0 %v382
    %407 = vmatprep.subr.bf16.mxu0 0
    %408 = vmatpush1.bf16.msra.mxu0 0
    %409 = vmatprep.subr.bf16.mxu0 0
    %410 = vmatpush1.bf16.msra.mxu0 0
    %411 = vmatprep.subr.bf16.mxu0 0
    %412 = vmatpush1.bf16.msra.mxu0 0
    %413 = vmatprep.subr.bf16.mxu0 0
    %414 = vmatpush1.bf16.msra.mxu0 0
    %415 = vmatprep.subr.bf16.mxu0 0
    %416 = vmatpush1.bf16.msra.mxu0 0
    %417 = vmatprep.subr.bf16.mxu0 0
    %418 = vmatpush1.bf16.msra.mxu0 0
    %419 = vmatprep.subr.bf16.mxu0 0
    %420 = vmatpush1.bf16.msra.mxu0 0
    %421 = vmatprep.subr.bf16.mxu0 0
    %422 = vmatpush1.bf16.msra.mxu0 0
    %423 = vmatprep.mubr.bf16.mxu0 0
    %424 = vmatmul.mubr.bf16.gmra.mrb[0].mxu0 %v320
    %v425 = vpop.f32.mrb[0].mxu0
    %v426 = vadd.f32 %v342, %v425
    %v427 = vpop.f32.mrb[0].mxu0
    %v428 = vpop.f32.mrb[0].mxu0
    %v429 = vadd.f32 %v342, %v428
    %v430 = vpop.f32.mrb[0].mxu0
    %431 = vdwg.mxu0
    %v432 = vmax.f32 %v426, 0.0
    %v433 = vmax.f32 %v429, 0.0
    %v434 = vpack.c.bf16 %v433, %v432
    %s435 = scalar_lea.vmem [#allocation2], 256
    %v436 = vld [vmem:[%s435] sm:$0xf]
    %v437 = vld [vmem:[%s435 + $0x4] sm:$0xf]
    %v438 = vld [vmem:[%s435 + $0x8] sm:$0xf]
    %v439 = vld [vmem:[%s435 + $0xc] sm:$0xf]
    %v440 = vld [vmem:[%s435 + $0x10] sm:$0xf]
    %v441 = vld [vmem:[%s435 + $0x14] sm:$0xf]
    %v442 = vld [vmem:[%s435 + $0x18] sm:$0xf]
    %v443 = vld [vmem:[%s435 + $0x1c] sm:$0xf]
    %v444 = vld [vmem:[%s435 + $0x20] sm:$0xf]
    %v445 = vld [vmem:[%s435 + $0x24] sm:$0xf]
    %v446 = vld [vmem:[%s435 + $0x28] sm:$0xf]
    %v447 = vld [vmem:[%s435 + $0x2c] sm:$0xf]
    %v448 = vld [vmem:[%s435 + $0x30] sm:$0xf]
    %v449 = vld [vmem:[%s435 + $0x34] sm:$0xf]
    %v450 = vld [vmem:[%s435 + $0x38] sm:$0xf]
    %v451 = vld [vmem:[%s435 + $0x3c] sm:$0xf]
    %v452 = vld [vmem:[%s2 + $0x4] sm:$0x1]
    %v453 = vlaneseq
    %v454 = vshrl.u32 %v453, 7
    %v455 = vsub.s32 0, %v454
    %v456 = vrot.slane %v452, %v455
    %v473 = vunpack.c.l.b16 %v436
    %v474 = vunpack.c.l.b16 %v437
    %v475 = vunpack.c.l.b16 %v438
    %v476 = vunpack.c.l.b16 %v439
    %v477 = vunpack.c.l.b16 %v440
    %v478 = vunpack.c.l.b16 %v441
    %v479 = vunpack.c.l.b16 %v442
    %v480 = vunpack.c.l.b16 %v443
    %v481 = vunpack.c.l.b16 %v444
    %v482 = vunpack.c.l.b16 %v445
    %v483 = vunpack.c.l.b16 %v446
    %v484 = vunpack.c.l.b16 %v447
    %v485 = vunpack.c.l.b16 %v448
    %v486 = vunpack.c.l.b16 %v449
    %v487 = vunpack.c.l.b16 %v450
    %v488 = vunpack.c.l.b16 %v451
    %v489 = vpack.c.b16 %v474, %v473
    %v490 = vpack.c.b16 %v476, %v475
    %v491 = vpack.c.b16 %v478, %v477
    %v492 = vpack.c.b16 %v480, %v479
    %v493 = vpack.c.b16 %v482, %v481
    %v494 = vpack.c.b16 %v484, %v483
    %v495 = vpack.c.b16 %v486, %v485
    %v496 = vpack.c.b16 %v488, %v487
    %505 = vmatprep.subr.bf16.mxu0 0
    %506 = vmatpush1.bf16.msra.mxu0 %v489
    %507 = vmatprep.subr.bf16.mxu0 0
    %508 = vmatpush1.bf16.msra.mxu0 %v490
    %509 = vmatprep.subr.bf16.mxu0 0
    %510 = vmatpush1.bf16.msra.mxu0 %v491
    %511 = vmatprep.subr.bf16.mxu0 0
    %512 = vmatpush1.bf16.msra.mxu0 %v492
    %513 = vmatprep.subr.bf16.mxu0 0
    %514 = vmatpush1.bf16.msra.mxu0 %v493
    %515 = vmatprep.subr.bf16.mxu0 0
    %516 = vmatpush1.bf16.msra.mxu0 %v494
    %517 = vmatprep.subr.bf16.mxu0 0
    %518 = vmatpush1.bf16.msra.mxu0 %v495
    %519 = vmatprep.subr.bf16.mxu0 0
    %520 = vmatpush1.bf16.msra.mxu0 %v496
    %521 = vmatprep.subr.bf16.mxu0 0
    %522 = vmatpush1.bf16.msra.mxu0 0
    %523 = vmatprep.subr.bf16.mxu0 0
    %524 = vmatpush1.bf16.msra.mxu0 0
    %525 = vmatprep.subr.bf16.mxu0 0
    %526 = vmatpush1.bf16.msra.mxu0 0
    %527 = vmatprep.subr.bf16.mxu0 0
    %528 = vmatpush1.bf16.msra.mxu0 0
    %529 = vmatprep.subr.bf16.mxu0 0
    %530 = vmatpush1.bf16.msra.mxu0 0
    %531 = vmatprep.subr.bf16.mxu0 0
    %532 = vmatpush1.bf16.msra.mxu0 0
    %533 = vmatprep.subr.bf16.mxu0 0
    %534 = vmatpush1.bf16.msra.mxu0 0
    %535 = vmatprep.subr.bf16.mxu0 0
    %536 = vmatpush1.bf16.msra.mxu0 0
    %537 = vmatprep.mubr.bf16.mxu0 0
    %538 = vmatmul.mubr.bf16.gmra.mrb[0].mxu0 %v434
    %v539 = vpop.f32.mrb[0].mxu0
    %v540 = vadd.f32 %v456, %v539
    %v541 = vpop.f32.mrb[0].mxu0
    %v542 = vpop.f32.mrb[0].mxu0
    %v543 = vadd.f32 %v456, %v542
    %v544 = vpop.f32.mrb[0].mxu0
    %545 = vdwg.mxu0
    %v546 = vmax.f32 %v540, 0.0
    %v547 = vmax.f32 %v543, 0.0
    %v548 = vpack.c.bf16 %v547, %v546
    %s549 = scalar_lea.vmem [#allocation2], 320
    %v550 = vld [vmem:[%s549] sm:$0xf]
    %v551 = vld [vmem:[%s549 + $0x4] sm:$0xf]
    %v552 = vld [vmem:[%s549 + $0x8] sm:$0xf]
    %v553 = vld [vmem:[%s549 + $0xc] sm:$0xf]
    %v554 = vld [vmem:[%s549 + $0x10] sm:$0xf]
    %v555 = vld [vmem:[%s549 + $0x14] sm:$0xf]
    %v556 = vld [vmem:[%s549 + $0x18] sm:$0xf]
    %v557 = vld [vmem:[%s549 + $0x1c] sm:$0xf]
    %v558 = vld [vmem:[%s549 + $0x20] sm:$0xf]
    %v559 = vld [vmem:[%s549 + $0x24] sm:$0xf]
    %v560 = vld [vmem:[%s549 + $0x28] sm:$0xf]
    %v561 = vld [vmem:[%s549 + $0x2c] sm:$0xf]
    %v562 = vld [vmem:[%s549 + $0x30] sm:$0xf]
    %v563 = vld [vmem:[%s549 + $0x34] sm:$0xf]
    %v564 = vld [vmem:[%s549 + $0x38] sm:$0xf]
    %v565 = vld [vmem:[%s549 + $0x3c] sm:$0xf]
    %v566 = vld [vmem:[%s2 + $0x5] sm:$0x1]
    %v567 = vlaneseq
    %v568 = vshrl.u32 %v567, 7
    %v569 = vsub.s32 0, %v568
    %v570 = vrot.slane %v566, %v569
    %v587 = vunpack.c.l.b16 %v550
    %v588 = vunpack.c.l.b16 %v551
    %v589 = vunpack.c.l.b16 %v552
    %v590 = vunpack.c.l.b16 %v553
    %v591 = vunpack.c.l.b16 %v554
    %v592 = vunpack.c.l.b16 %v555
    %v593 = vunpack.c.l.b16 %v556
    %v594 = vunpack.c.l.b16 %v557
    %v595 = vunpack.c.l.b16 %v558
    %v596 = vunpack.c.l.b16 %v559
    %v597 = vunpack.c.l.b16 %v560
    %v598 = vunpack.c.l.b16 %v561
    %v599 = vunpack.c.l.b16 %v562
    %v600 = vunpack.c.l.b16 %v563
    %v601 = vunpack.c.l.b16 %v564
    %v602 = vunpack.c.l.b16 %v565
    %v603 = vpack.c.b16 %v588, %v587
    %v604 = vpack.c.b16 %v590, %v589
    %v605 = vpack.c.b16 %v592, %v591
    %v606 = vpack.c.b16 %v594, %v593
    %v607 = vpack.c.b16 %v596, %v595
    %v608 = vpack.c.b16 %v598, %v597
    %v609 = vpack.c.b16 %v600, %v599
    %v610 = vpack.c.b16 %v602, %v601
    %619 = vmatprep.subr.bf16.mxu0 0
    %620 = vmatpush1.bf16.msra.mxu0 %v603
    %621 = vmatprep.subr.bf16.mxu0 0
    %622 = vmatpush1.bf16.msra.mxu0 %v604
    %623 = vmatprep.subr.bf16.mxu0 0
    %624 = vmatpush1.bf16.msra.mxu0 %v605
    %625 = vmatprep.subr.bf16.mxu0 0
    %626 = vmatpush1.bf16.msra.mxu0 %v606
    %627 = vmatprep.subr.bf16.mxu0 0
    %628 = vmatpush1.bf16.msra.mxu0 %v607
    %629 = vmatprep.subr.bf16.mxu0 0
    %630 = vmatpush1.bf16.msra.mxu0 %v608
    %631 = vmatprep.subr.bf16.mxu0 0
    %632 = vmatpush1.bf16.msra.mxu0 %v609
    %633 = vmatprep.subr.bf16.mxu0 0
    %634 = vmatpush1.bf16.msra.mxu0 %v610
    %635 = vmatprep.subr.bf16.mxu0 0
    %636 = vmatpush1.bf16.msra.mxu0 0
    %637 = vmatprep.subr.bf16.mxu0 0
    %638 = vmatpush1.bf16.msra.mxu0 0
    %639 = vmatprep.subr.bf16.mxu0 0
    %640 = vmatpush1.bf16.msra.mxu0 0
    %641 = vmatprep.subr.bf16.mxu0 0
    %642 = vmatpush1.bf16.msra.mxu0 0
    %643 = vmatprep.subr.bf16.mxu0 0
    %644 = vmatpush1.bf16.msra.mxu0 0
    %645 = vmatprep.subr.bf16.mxu0 0
    %646 = vmatpush1.bf16.msra.mxu0 0
    %647 = vmatprep.subr.bf16.mxu0 0
    %648 = vmatpush1.bf16.msra.mxu0 0
    %649 = vmatprep.subr.bf16.mxu0 0
    %650 = vmatpush1.bf16.msra.mxu0 0
    %651 = vmatprep.mubr.bf16.mxu0 0
    %652 = vmatmul.mubr.bf16.gmra.mrb[0].mxu0 %v548
    %v653 = vpop.f32.mrb[0].mxu0
    %v654 = vadd.f32 %v570, %v653
    %v655 = vpop.f32.mrb[0].mxu0
    %v656 = vpop.f32.mrb[0].mxu0
    %v657 = vadd.f32 %v570, %v656
    %v658 = vpop.f32.mrb[0].mxu0
    %659 = vdwg.mxu0
    %v660 = vmax.f32 %v654, 0.0
    %v661 = vmax.f32 %v657, 0.0
    %v662 = vpack.c.bf16 %v661, %v660
    %s663 = scalar_lea.vmem [#allocation2], 384
    %v664 = vld [vmem:[%s663] sm:$0xf]
    %v665 = vld [vmem:[%s663 + $0x4] sm:$0xf]
    %v666 = vld [vmem:[%s663 + $0x8] sm:$0xf]
    %v667 = vld [vmem:[%s663 + $0xc] sm:$0xf]
    %v668 = vld [vmem:[%s663 + $0x10] sm:$0xf]
    %v669 = vld [vmem:[%s663 + $0x14] sm:$0xf]
    %v670 = vld [vmem:[%s663 + $0x18] sm:$0xf]
    %v671 = vld [vmem:[%s663 + $0x1c] sm:$0xf]
    %v672 = vld [vmem:[%s663 + $0x20] sm:$0xf]
    %v673 = vld [vmem:[%s663 + $0x24] sm:$0xf]
    %v674 = vld [vmem:[%s663 + $0x28] sm:$0xf]
    %v675 = vld [vmem:[%s663 + $0x2c] sm:$0xf]
    %v676 = vld [vmem:[%s663 + $0x30] sm:$0xf]
    %v677 = vld [vmem:[%s663 + $0x34] sm:$0xf]
    %v678 = vld [vmem:[%s663 + $0x38] sm:$0xf]
    %v679 = vld [vmem:[%s663 + $0x3c] sm:$0xf]
    %v680 = vld [vmem:[%s2 + $0x6] sm:$0x1]
    %v681 = vlaneseq
    %v682 = vshrl.u32 %v681, 7
    %v683 = vsub.s32 0, %v682
    %v684 = vrot.slane %v680, %v683
    %v701 = vunpack.c.l.b16 %v664
    %v702 = vunpack.c.l.b16 %v665
    %v703 = vunpack.c.l.b16 %v666
    %v704 = vunpack.c.l.b16 %v667
    %v705 = vunpack.c.l.b16 %v668
    %v706 = vunpack.c.l.b16 %v669
    %v707 = vunpack.c.l.b16 %v670
    %v708 = vunpack.c.l.b16 %v671
    %v709 = vunpack.c.l.b16 %v672
    %v710 = vunpack.c.l.b16 %v673
    %v711 = vunpack.c.l.b16 %v674
    %v712 = vunpack.c.l.b16 %v675
    %v713 = vunpack.c.l.b16 %v676
    %v714 = vunpack.c.l.b16 %v677
    %v715 = vunpack.c.l.b16 %v678
    %v716 = vunpack.c.l.b16 %v679
    %v717 = vpack.c.b16 %v702, %v701
    %v718 = vpack.c.b16 %v704, %v703
    %v719 = vpack.c.b16 %v706, %v705
    %v720 = vpack.c.b16 %v708, %v707
    %v721 = vpack.c.b16 %v710, %v709
    %v722 = vpack.c.b16 %v712, %v711
    %v723 = vpack.c.b16 %v714, %v713
    %v724 = vpack.c.b16 %v716, %v715
    %733 = vmatprep.subr.bf16.mxu0 0
    %734 = vmatpush1.bf16.msra.mxu0 %v717
    %735 = vmatprep.subr.bf16.mxu0 0
    %736 = vmatpush1.bf16.msra.mxu0 %v718
    %737 = vmatprep.subr.bf16.mxu0 0
    %738 = vmatpush1.bf16.msra.mxu0 %v719
    %739 = vmatprep.subr.bf16.mxu0 0
    %740 = vmatpush1.bf16.msra.mxu0 %v720
    %741 = vmatprep.subr.bf16.mxu0 0
    %742 = vmatpush1.bf16.msra.mxu0 %v721
    %743 = vmatprep.subr.bf16.mxu0 0
    %744 = vmatpush1.bf16.msra.mxu0 %v722
    %745 = vmatprep.subr.bf16.mxu0 0
    %746 = vmatpush1.bf16.msra.mxu0 %v723
    %747 = vmatprep.subr.bf16.mxu0 0
    %748 = vmatpush1.bf16.msra.mxu0 %v724
    %749 = vmatprep.subr.bf16.mxu0 0
    %750 = vmatpush1.bf16.msra.mxu0 0
    %751 = vmatprep.subr.bf16.mxu0 0
    %752 = vmatpush1.bf16.msra.mxu0 0
    %753 = vmatprep.subr.bf16.mxu0 0
    %754 = vmatpush1.bf16.msra.mxu0 0
    %755 = vmatprep.subr.bf16.mxu0 0
    %756 = vmatpush1.bf16.msra.mxu0 0
    %757 = vmatprep.subr.bf16.mxu0 0
    %758 = vmatpush1.bf16.msra.mxu0 0
    %759 = vmatprep.subr.bf16.mxu0 0
    %760 = vmatpush1.bf16.msra.mxu0 0
    %761 = vmatprep.subr.bf16.mxu0 0
    %762 = vmatpush1.bf16.msra.mxu0 0
    %763 = vmatprep.subr.bf16.mxu0 0
    %764 = vmatpush1.bf16.msra.mxu0 0
    %765 = vmatprep.mubr.bf16.mxu0 0
    %766 = vmatmul.mubr.bf16.gmra.mrb[0].mxu0 %v662
    %v767 = vpop.f32.mrb[0].mxu0
    %v768 = vadd.f32 %v684, %v767
    %v769 = vpop.f32.mrb[0].mxu0
    %v770 = vpop.f32.mrb[0].mxu0
    %v771 = vadd.f32 %v684, %v770
    %v772 = vpop.f32.mrb[0].mxu0
    %773 = vdwg.mxu0
    %vm774 = vcmask 7168
    %775 = vst.msk [vmem:[%s3] sm:$0xff] %vm774, %v768
    %776 = vst.msk [vmem:[%s3 + $0x8] sm:$0xff] %vm774, %v771
    // Predicated region
    $region18: #{mlp_forward.1} parent=1 // pred_check
      _
    $region19: #{mlp_forward.1} parent=1 // pred_check_branch
      %778 = sbr.rel (0) target = $region21
    $region20: #{mlp_forward.1} parent=1 // pred_region
      _
    $region21: #{mlp_forward.1} parent=1 // pred_fallthru
      _
    // Predicated region
    $region22: #{mlp_forward.1} parent=1 // pred_check
      _
    $region23: #{mlp_forward.1} parent=1 // pred_check_branch
      %780 = sbr.rel (0) target = $region25
    $region24: #{mlp_forward.1} parent=1 // pred_region
      _
    $region25: #{mlp_forward.1} parent=1 // pred_fallthru
      _
    %781 = vsyncpa [#allocation3], 1

</llo_original>
